<compile_context>
chip_gen: v7x
topology: tpu7x:2x2x1
jax: 0.10.0
libtpu: 0.0.40
codegen_flags: <defaults>
</compile_context>

<pallas_src>
import functools

import jax
import jax.numpy as jnp
from jax.experimental import pallas as pl
from jax.experimental.pallas import tpu as pltpu


def attention_kernel(x_ref, w_ref, o_ref, *, use_mxu_scores):
    x = x_ref[...]                       # (BT, T, H) in input dtype (no full f32 copy)
    w = w_ref[...]                       # (1, H)
    bt, t, h = x.shape

    if use_mxu_scores:
        # scores via one 2D MXU matmul: (BT*T, H) x (1, H)^T -> (BT*T, 1).
        # The MXU is otherwise idle in this kernel, so this overlaps with the
        # x DMA and keeps the H-reduction off the XLU (binding on v6e/v7x).
        s = jax.lax.dot_general(
            x.reshape(bt * t, h), w,
            dimension_numbers=(((1,), (1,)), ((), ())),
            preferred_element_type=jnp.float32,
            precision=jax.lax.Precision.HIGHEST,
        ).reshape(bt, t, 1)
    else:
        # VPU multiply + lane reduce over H (v5e-friendly; also the fallback
        # when T % 8 != 0 and the 2D reshape would force a relayout).
        s = jnp.sum(x.astype(jnp.float32) * w[None, :, :].astype(jnp.float32),
                    axis=-1, keepdims=True)                        # (BT, T, 1)

    # Numerically-stable softmax over T, kept in column layout (sublane reduces).
    m = jnp.max(s, axis=1, keepdims=True)                          # (BT, 1, 1)
    e = jnp.exp(s - m)                                             # (BT, T, 1) EUP
    den = jnp.sum(e, axis=1, keepdims=True)                        # (BT, 1, 1)

    # Unnormalized weighted sum over T (VPU per-row scale + sublane reduce),
    # accumulated in f32; normalization deferred to the small (BT, 1, H) result.
    p = x * e.astype(x.dtype)                                      # (BT, T, H)
    num = jnp.sum(p, axis=1, keepdims=True, dtype=jnp.float32)     # (BT, 1, H)
    out = num / den                                                # exact divide
    o_ref[...] = out.astype(o_ref.dtype)


def _vmem_limit_bytes():
    """Per-generation VMEM cap: ~64 MiB on the 128 MiB parts (v5e/v6e),
    <=~40 MiB on the 64 MiB-per-TC v7x; conservative fallback if unqueryable."""
    try:
        cap = int(pltpu.get_tpu_info().vmem_capacity_bytes)
    except Exception:
        cap = 64 * 1024 * 1024
    return max(16 * 1024 * 1024, min(int(cap * 0.6), 64 * 1024 * 1024))


def _pick_b_tile(B, T, H, itemsize, vmem_limit):
    """Largest batch tile whose working set fits the VMEM budget.

    Per batch row: double-buffered input block (2x itemsize) plus ~3 f32-sized
    full-tile temporaries (x*e product, possible f32 upcast, reduce temp).
    """
    per_row = T * H * (2 * itemsize + 3 * 4)
    bt = max(1, int((vmem_limit * 3 // 4) // max(per_row, 1)))
    bt = min(bt, B)
    # >= 8 grid steps when B allows: >= 4 blocks in flight per TensorCore on
    # v7x (2 TCs), so the large x DMA stays hidden; ~0.35 us/step overhead is
    # negligible at these block sizes.
    bt = min(bt, max(1, pl.cdiv(B, 8)))
    return int(bt)


def attention_forward(x, w, b=None, *, b_tile=None):
    """x: (B, T, H); w: (H, 1) or (H,); b: scalar bias of nn.Linear(H, 1).

    Returns sum_T(x * softmax(x @ w + b, axis=T)) with shape (B, H). The scalar
    bias is accepted for API parity but unused: softmax(s + b) == softmax(s)
    for a bias shared across T, so the add is a mathematical no-op.
    """
    del b
    B, T, H = x.shape
    w_row = jnp.reshape(w, (1, H)).astype(x.dtype)

    vmem_limit = _vmem_limit_bytes()
    if b_tile is None:
        b_tile = _pick_b_tile(B, T, H, x.dtype.itemsize, vmem_limit)

    num_tiles = pl.cdiv(B, b_tile)
    B_pad = num_tiles * b_tile
    if B_pad != B:
        # Zero-padded rows produce a finite uniform softmax and are sliced away.
        x = jnp.pad(x, ((0, B_pad - B), (0, 0), (0, 0)))

    use_mxu_scores = (T % 8) == 0   # keeps the in-kernel 2D reshape layout-preserving
    kernel = functools.partial(attention_kernel, use_mxu_scores=use_mxu_scores)

    # TODO(synk): for sequences where a single (b_tile, T, H) block cannot fit
    # VMEM even at b_tile=1 (threshold halves on v7x), add an "arbitrary" grid
    # axis over T with online-softmax (m, l, acc) scratch accumulators.
    out = pl.pallas_call(
        kernel,
        out_shape=jax.ShapeDtypeStruct((B_pad, 1, H), x.dtype),
        grid_spec=pltpu.PrefetchScalarGridSpec(
            num_scalar_prefetch=0,
            grid=(num_tiles,),
            in_specs=[
                pl.BlockSpec((b_tile, T, H), lambda i: (i, 0, 0)),   # x tile
                pl.BlockSpec((1, H), lambda i: (0, 0)),              # attn weight row
            ],
            out_specs=pl.BlockSpec((b_tile, 1, H), lambda i: (i, 0, 0)),
        ),
        compiler_params=pltpu.CompilerParams(
            dimension_semantics=("parallel",),       # batch axis -> megacore shard
            vmem_limit_bytes=vmem_limit,             # per-generation cap
        ),
    )(x, w_row)

    # (B_pad, 1, H) -> (B, H): metadata-only reshape + slice outside the kernel.
    return out.reshape(B_pad, H)[:B]


def reference_forward(x, w, b):
    # Exact f32 reference (elementwise contraction, no MXU precision ambiguity),
    # including the bias to prove the kernel's bias-drop is semantics-preserving.
    scores = jnp.sum(x * jnp.reshape(w, (1, 1, -1)), axis=-1) + b      # (B, T)
    weights = jax.nn.softmax(scores, axis=1)[..., None]                 # (B, T, 1)
    return jnp.sum(x * weights, axis=1)                                 # (B, H)


if __name__ == "__main__":
    B, T, H = 2, 8, 32

    key = jax.random.PRNGKey(0)
    kx, kw, kb = jax.random.split(key, 3)

    x = jax.random.normal(kx, (B, T, H), dtype=jnp.float32)
    # deterministic "init" of nn.Linear(hidden_dim, 1) parameters
    w = jax.random.normal(kw, (H, 1), dtype=jnp.float32) * 0.1
    b = jax.random.normal(kb, (), dtype=jnp.float32) * 0.1

    out = jax.block_until_ready(attention_forward(x, w, b))
    ref = reference_forward(x, w, b)

    assert out.shape == (B, H)
    err = jnp.max(jnp.abs(out - ref))
    assert jnp.allclose(out, ref, atol=1e-3, rtol=1e-3), f"max abs err {err}"

    print("KERNEL_OK")
</pallas_src>

<mosaic_0001>
module attributes {stable_mosaic.version = 11 : i64} {
  func.func @attention_kernel(%arg0: i32, %arg1: memref<1x8x32xf32, #tpu.memory_space<vmem>>, %arg2: memref<1x32xf32, #tpu.memory_space<vmem>>, %arg3: memref<1x1x32xf32, #tpu.memory_space<vmem>>) attributes {dimension_semantics = [#tpu.dimension_semantics<parallel>], iteration_bounds = array<i64: 2>, scalar_prefetch = 0 : i64, scratch_operands = 0 : i64, tpu.core_type = #tpu.core_type<tc>, window_params = [{transform_indices = @transform_0, window_bounds = array<i64: 1, 8, 32>}, {pipeline_mode = #tpu.pipeline_mode<synchronous>, transform_indices = @transform_1, window_bounds = array<i64: 1, 32>}, {transform_indices = @transform_2, window_bounds = array<i64: 1, 1, 32>}]} {
    %c0 = arith.constant 0 : index
    %c0_0 = arith.constant 0 : index
    %c0_1 = arith.constant 0 : index
    %0 = vector.load %arg1[%c0, %c0_0, %c0_1] : memref<1x8x32xf32, #tpu.memory_space<vmem>>, vector<1x8x32xf32>
    %c0_2 = arith.constant 0 : index
    %c0_3 = arith.constant 0 : index
    %1 = vector.load %arg2[%c0_2, %c0_3] : memref<1x32xf32, #tpu.memory_space<vmem>>, vector<1x32xf32>
    %2 = vector.shape_cast %0 : vector<1x8x32xf32> to vector<8x32xf32>
    %cst = arith.constant dense<0.000000e+00> : vector<8x1xf32>
    %3 = tpu.matmul %2, %1, %cst {dimension_numbers = #tpu.dot_dimension_numbers<[1], [1], [0], [0], [0, 0, 1, 0], [], []>, precision = #tpu.contract_precision<fp32>} : vector<8x32xf32>, vector<1x32xf32>, vector<8x1xf32> -> vector<8x1xf32>
    %4 = vector.shape_cast %3 : vector<8x1xf32> to vector<1x8x1xf32>
    %cst_4 = arith.constant dense<0xFF800000> : vector<1x1xf32>
    %5 = vector.multi_reduction <maximumf>, %4, %cst_4 [1] : vector<1x8x1xf32> to vector<1x1xf32>
    %6 = vector.shape_cast %5 : vector<1x1xf32> to vector<1x1x1xf32>
    %7 = vector.broadcast %6 : vector<1x1x1xf32> to vector<1x8x1xf32>
    %8 = arith.subf %4, %7 : vector<1x8x1xf32>
    %9 = math.exp %8 : vector<1x8x1xf32>
    %cst_5 = arith.constant dense<0.000000e+00> : vector<1x1xf32>
    %10 = vector.multi_reduction <add>, %9, %cst_5 [1] : vector<1x8x1xf32> to vector<1x1xf32>
    %11 = vector.shape_cast %10 : vector<1x1xf32> to vector<1x1x1xf32>
    %12 = vector.broadcast %9 : vector<1x8x1xf32> to vector<1x8x32xf32>
    %13 = arith.mulf %0, %12 : vector<1x8x32xf32>
    %cst_6 = arith.constant dense<0.000000e+00> : vector<1x32xf32>
    %14 = vector.multi_reduction <add>, %13, %cst_6 [1] : vector<1x8x32xf32> to vector<1x32xf32>
    %15 = vector.shape_cast %14 : vector<1x32xf32> to vector<1x1x32xf32>
    %16 = vector.broadcast %11 : vector<1x1x1xf32> to vector<1x1x32xf32>
    %17 = arith.divf %15, %16 : vector<1x1x32xf32>
    %c0_7 = arith.constant 0 : index
    %c0_8 = arith.constant 0 : index
    %c0_9 = arith.constant 0 : index
    %18 = vector.load %arg3[%c0_7, %c0_8, %c0_9] : memref<1x1x32xf32, #tpu.memory_space<vmem>>, vector<1x1x32xf32>
    tpu.vector_store %arg3[%c0_7, %c0_8, %c0_9], %17 {strides = array<i32>} : memref<1x1x32xf32, #tpu.memory_space<vmem>>, vector<1x1x32xf32>,
    return
  }
  func.func @transform_0(%arg0: i32) -> (i32, i32, i32) {
    %c0_i32 = arith.constant 0 : i32
    %c0_i32_0 = arith.constant 0 : i32
    %c0_i32_1 = arith.constant 0 : i32
    return %arg0, %c0_i32, %c0_i32_0 : i32, i32, i32
  }
  func.func @transform_1(%arg0: i32) -> (i32, i32) {
    %c0_i32 = arith.constant 0 : i32
    %c0_i32_0 = arith.constant 0 : i32
    %c0_i32_1 = arith.constant 0 : i32
    return %c0_i32, %c0_i32_0 : i32, i32
  }
  func.func @transform_2(%arg0: i32) -> (i32, i32, i32) {
    %c0_i32 = arith.constant 0 : i32
    %c0_i32_0 = arith.constant 0 : i32
    %c0_i32_1 = arith.constant 0 : i32
    return %arg0, %c0_i32, %c0_i32_0 : i32, i32, i32
  }
}

</mosaic_0001>

<llo_original>
// kernel: tpu_custom_call.1
$region0: #{tpu_custom_call.1}
  #allocation0 [shape = 'u32[]', space=smem, size = 0x4, offset = 0x4, fixed_abs, tag = 'smem constant byte address 0x4 - core index']
  #allocation1 [shape = 'u32[144,128]{1,0:T(1,128)}', space=vmem, size = 0x12000, scoped, tag = 'internal scratch']
  %s0 = inlined_call_operand.hbm [shape: f32[2,8,32], index: 0, kind: input, shape index: {}]
  %s1 = inlined_call_operand.vmem [shape: f32[1,32], index: 1, kind: input, shape index: {}]
  %s2 = inlined_call_operand.hbm [shape: f32[2,1,32], index: 2, kind: output, shape index: {}]
  %s3 = sld [smem:[#allocation0]]
  $region45: #{tpu_custom_call.1} parent=0
    _
  %s5 = ssub.s32 1, %s3
  %s6 = scalar_select 0, %s5, %s3
  $region1: #{tpu_custom_call.1} parent=0
    #allocation2 [shape = 'u8[8192]{0}', space=vmem, size = 0x2000, scoped, tag = 'input window, operand 0']
    #allocation3 [shape = 's32[2]{0}', space=sflag, size = 0x8, scoped, tag = 'scoped memory for tpu_custom_call.1']
    #allocation4 [shape = 's32[2]{0}', space=sflag, size = 0x8, scoped, tag = 'scoped memory for tpu_custom_call.1']
    #allocation5 [shape = 'u8[1024]{0}', space=vmem, size = 0x400, scoped, tag = 'output window, operand 0']
    %7 = vsyncpa [#allocation3], 0
    %s8 = scalar_lea.sflag [#allocation3], 1
    %9 = vsyncpa %s8, 0
    %10 = vsyncpa [#allocation4], 0
    %s11 = scalar_lea.sflag [#allocation4], 1
    %12 = vsyncpa %s11, 0
    loop: start=0, step=1, limit=4
    $region2: #{tpu_custom_call.1} parent=1 // loop_pre_header
      _
    $region3: #{tpu_custom_call.1} parent=1 // loop_header
      %s14 = sphi 0, %s18
      %p15 = scmp.ge.s32.totalorder %s14, 4
      %s24 = sphi 0, %s26
      %s27 = sphi 0, %s24
      %s28 = sphi 0, %s27
      %s44 = sphi 0, %s28
      %s48 = sphi 0, %s48
      %s50 = sphi 0, %s48
      %s51 = sphi 0, %s50
      %s65 = sphi 0, %s51
      %s71 = sphi 0, %s73
      %s74 = sphi 0, %s71
      %s75 = sphi 0, %s74
      %s91 = sphi 0, %s75
    $region4: #{tpu_custom_call.1} parent=1 // loop_header_branch
      %17 = sbr.rel (%p15) target = $region8
    $region5: #{tpu_custom_call.1} parent=1 // loop_body
      %s19 = ssub.s32 %s14, 1
      %s20 = ssub.s32 %s14, 2
      %s21 = sadd.s32 %s14, 1
      %s22 = ssub.s32 %s14, %s21
      %p23 = scmp.eq.s32.totalorder %s22, 0
      %s25 = sadd.s32 %s24, 1
      %s26 = scalar_select %p23, %s24, %s25
      %p29 = pneg %p23
      %p30 = scmp.eq.s32.totalorder %s14, 1
      %p31 = por %p29, %p30
      %p32 = scmp.ne.s32.totalorder %s24, %s27
      %p33 = scmp.eq.s32.totalorder %s14, 0
      %p34 = por %p32, %p33
      %p35 = scmp.ne.s32.totalorder %s24, %s27
      %p36 = scmp.eq.s32.totalorder %s19, 1
      %p37 = por %p35, %p36
      %p38 = scmp.ne.s32.totalorder %s27, %s28
      %p39 = scmp.eq.s32.totalorder %s19, 0
      %p40 = por %p38, %p39
      %p41 = scmp.ne.s32.totalorder %s27, %s28
      %p42 = scmp.eq.s32.totalorder %s20, 1
      %p43 = por %p41, %p42
      %p45 = scmp.ne.s32.totalorder %s28, %s44
      %p46 = scmp.eq.s32.totalorder %s20, 0
      %p47 = por %p45, %p46
      %s49 = sadd.s32 %s48, 1
      %p52 = scmp.eq.s32.totalorder %s14, 1
      %p53 = scmp.ne.s32.totalorder %s48, %s50
      %p54 = scmp.eq.s32.totalorder %s14, 0
      %p55 = por %p53, %p54
      %p56 = scmp.ne.s32.totalorder %s48, %s50
      %p57 = scmp.eq.s32.totalorder %s19, 1
      %p58 = por %p56, %p57
      %p59 = scmp.ne.s32.totalorder %s50, %s51
      %p60 = scmp.eq.s32.totalorder %s19, 0
      %p61 = por %p59, %p60
      %p62 = scmp.ne.s32.totalorder %s50, %s51
      %p63 = scmp.eq.s32.totalorder %s20, 1
      %p64 = por %p62, %p63
      %p66 = scmp.ne.s32.totalorder %s51, %s65
      %p67 = scmp.eq.s32.totalorder %s20, 0
      %p68 = por %p66, %p67
      %s69 = ssub.s32 %s14, %s21
      %p70 = scmp.eq.s32.totalorder %s69, 0
      %s72 = sadd.s32 %s71, 1
      %s73 = scalar_select %p70, %s71, %s72
      %p76 = pneg %p70
      %p77 = scmp.eq.s32.totalorder %s14, 1
      %p78 = por %p76, %p77
      %p79 = scmp.ne.s32.totalorder %s71, %s74
      %p80 = scmp.eq.s32.totalorder %s14, 0
      %p81 = por %p79, %p80
      %p82 = scmp.ne.s32.totalorder %s71, %s74
      %p83 = scmp.eq.s32.totalorder %s19, 1
      %p84 = por %p82, %p83
      %p85 = scmp.ne.s32.totalorder %s74, %s75
      %p86 = scmp.eq.s32.totalorder %s19, 0
      %p87 = por %p85, %p86
      %p88 = scmp.ne.s32.totalorder %s74, %s75
      %p89 = scmp.eq.s32.totalorder %s20, 1
      %p90 = por %p88, %p89
      %p92 = scmp.ne.s32.totalorder %s75, %s91
      %p93 = scmp.eq.s32.totalorder %s20, 0
      %p94 = por %p92, %p93
      %p95 = scmp.le.s32.totalorder 1, %s14
      %p96 = scmp.lt.s32.totalorder %s14, 3
      %p97 = pnand %p95, %p96
      %p98 = pneg %p97
      // Predicated region
      $region9: #{tpu_custom_call.1} parent=5 // pred_check
        _
      $region10: #{tpu_custom_call.1} parent=5 // pred_check_branch
        %100 = sbr.rel (%p97) target = $region12
      $region11: #{tpu_custom_call.1} parent=5 // pred_region
        %s101 = ssub.s32 %s14, 1
        // Predicated region
        $region13: #{tpu_custom_call.1} parent=11 // pred_check
          %p102 = pneg %p61
        $region14: #{tpu_custom_call.1} parent=11 // pred_check_branch
          %104 = sbr.rel (%p102) target = $region16
        $region15: #{tpu_custom_call.1} parent=11 // pred_region
          _
        $region16: #{tpu_custom_call.1} parent=11 // pred_fallthru
          _
      $region12: #{tpu_custom_call.1} parent=5 // pred_fallthru
        _
      %p105 = scmp.lt.s32.totalorder %s14, 2
      // Predicated region
      $region17: #{tpu_custom_call.1} parent=5 // pred_check
        %p106 = pneg %p105
      $region18: #{tpu_custom_call.1} parent=5 // pred_check_branch
        %108 = sbr.rel (%p106) target = $region20
      $region19: #{tpu_custom_call.1} parent=5 // pred_region
        // Predicated region
        $region21: #{tpu_custom_call.1} parent=19 // pred_check
          %p109 = pneg %p34
        $region22: #{tpu_custom_call.1} parent=19 // pred_check_branch
          %111 = sbr.rel (%p109) target = $region24
        $region23: #{tpu_custom_call.1} parent=19 // pred_region
          %s112 = sand.u32 %s24, 1
          %s113 = scalar_lea.sflag [#allocation3], %s112
          %s114 = sand.u32 %s24, 1
          %s115 = smul.addr %s114, 8
          %s116 = scalar_lea.vmem [#allocation2], %s115
          %s118 = ssub.s32 128, 128
          %119 = vsyncadd %s113, %s118
          %s120 = smul.addr %s14, 128
          %s121 = scalar_lea.hbm %s0, %s120
          %s123 = sshll.u32 %s116, 4
          %s124 = int_to_ptr.vmem [resolvable:$true] %s123
          %126 = dma.hbm_to_vmem [thread:$0]  %s121, 128, %s124, %s113
        $region24: #{tpu_custom_call.1} parent=19 // pred_fallthru
          _
      $region20: #{tpu_custom_call.1} parent=5 // pred_fallthru
        _
      %p127 = scmp.le.s32.totalorder 1, %s14
      %p128 = scmp.lt.s32.totalorder %s14, 3
      %p129 = pnand %p127, %p128
      %p130 = pneg %p129
      // Predicated region
      $region25: #{tpu_custom_call.1} parent=5 // pred_check
        _
      $region26: #{tpu_custom_call.1} parent=5 // pred_check_branch
        %132 = sbr.rel (%p129) target = $region28
      $region27: #{tpu_custom_call.1} parent=5 // pred_region
        %s133 = ssub.s32 %s14, 1
        %s134 = sand.u32 %s27, 1
        %s135 = scalar_lea.sflag [#allocation3], %s134
        %s136 = sand.u32 %s27, 1
        %s137 = smul.addr %s136, 8
        %s138 = scalar_lea.vmem [#allocation2], %s137
        // Predicated region
        $region29: #{tpu_custom_call.1} parent=27 // pred_check
          %p139 = pneg %p40
        $region30: #{tpu_custom_call.1} parent=27 // pred_check_branch
          %141 = sbr.rel (%p139) target = $region32
        $region31: #{tpu_custom_call.1} parent=27 // pred_region
          %142 = dma.done %s135, 128
        $region32: #{tpu_custom_call.1} parent=27 // pred_fallthru
          _
        %s143 = sand.u32 %s27, 1
        %s144 = scalar_lea.sflag [#allocation3], %s143
        %s145 = sand.u32 %s27, 1
        %s146 = smul.addr %s145, 8
        %s147 = scalar_lea.vmem [#allocation2], %s146
        %p148 = pneg %p40
        %p149 = pneg %p37
        %p150 = pneg %p61
        %p151 = pneg %p58
        %p152 = pneg %p87
        %p153 = pneg %p84
        %s154 = sand.u32 %s74, 1
        %s155 = scalar_lea.sflag [#allocation4], %s154
        %s156 = sand.u32 %s74, 1
        %s157 = scalar_lea.vmem [#allocation5], %s156
        %v158 = vld [vmem:[%s138] sm:$0xff]
        %v159 = vld [vmem:[%s1] sm:$0x1]
        %v161 = vlaneseq
        %v162 = vshrl.u32 %v161, 7
        %v163 = vsub.s32 0, %v162
        %v164 = vrot.slane %v159, %v163
        %v166 = vmul.f32 %v158, %v164
        %vm167 = vcmask 261120
        %v168 = vsel %vm167, %v166, 0.0
        %169 = vadd.xlane.f32.xlu0 %v168
        %v170 = vpop.xlane.xlu0 %169
        %v171 = vrot.slane %v170, 4
        %v172 = vmax.f32 %v170, %v171
        %v173 = vrot.slane %v172, 2
        %v174 = vmax.f32 %v172, %v173
        %v175 = vrot.slane %v174, 1
        %v176 = vmax.f32 %v174, %v175
        %v177 = vsub.f32 %v170, %v176
        %v178 = vmul.f32 %v177, 1.442695
        %v179 = vpow.pop %v178
        %v180 = vrot.slane %v179, 4
        %v181 = vadd.f32 %v179, %v180
        %v182 = vrot.slane %v181, 2
        %v183 = vadd.f32 %v181, %v182
        %v184 = vrot.slane %v183, 1
        %v185 = vadd.f32 %v183, %v184
        %v186 = vmul.f32 %v158, %v179
        %v187 = vsel %vm167, %v186, 0.0
        %v188 = vrot.slane %v187, 4
        %v189 = vadd.f32 %v187, %v188
        %v190 = vrot.slane %v189, 2
        %v191 = vadd.f32 %v189, %v190
        %v192 = vrot.slane %v191, 1
        %v193 = vadd.f32 %v191, %v192
        %v194 = vrcp.pop %v185
        %v195 = vmul.f32 %v193, %v194
        %vm196 = vcmask 253952
        %197 = vst.msk [vmem:[%s157] sm:$0x1] %vm196, %v195
        %s198 = sand.u32 %s74, 1
        %s199 = scalar_lea.sflag [#allocation4], %s198
        %s200 = sand.u32 %s74, 1
        %s201 = scalar_lea.vmem [#allocation5], %s200
        // Predicated region
        $region33: #{tpu_custom_call.1} parent=27 // pred_check
          %p202 = pneg %p84
        $region34: #{tpu_custom_call.1} parent=27 // pred_check_branch
          %204 = sbr.rel (%p202) target = $region36
        $region35: #{tpu_custom_call.1} parent=27 // pred_region
          %s206 = ssub.s32 16, 16
          %207 = vsyncadd %s199, %s206
          %s208 = smul.addr %s19, 16
          %s209 = scalar_lea.hbm %s2, %s208
          %s211 = sshll.u32 %s201, 4
          %s212 = int_to_ptr.vmem [resolvable:$true] %s211
          %214 = dma.vmem_to_hbm [thread:$0]  %s212, 16, %s209, %s199
        $region36: #{tpu_custom_call.1} parent=27 // pred_fallthru
          _
      $region28: #{tpu_custom_call.1} parent=5 // pred_fallthru
        _
      %p215 = scmp.le.s32.totalorder 2, %s14
      // Predicated region
      $region37: #{tpu_custom_call.1} parent=5 // pred_check
        %p216 = pneg %p215
      $region38: #{tpu_custom_call.1} parent=5 // pred_check_branch
        %218 = sbr.rel (%p216) target = $region40
      $region39: #{tpu_custom_call.1} parent=5 // pred_region
        %s219 = ssub.s32 %s14, 2
        // Predicated region
        $region41: #{tpu_custom_call.1} parent=39 // pred_check
          %p220 = pneg %p90
        $region42: #{tpu_custom_call.1} parent=39 // pred_check_branch
          %222 = sbr.rel (%p220) target = $region44
        $region43: #{tpu_custom_call.1} parent=39 // pred_region
          %s223 = sand.u32 %s75, 1
          %s224 = scalar_lea.sflag [#allocation4], %s223
          %s225 = sand.u32 %s75, 1
          %s226 = scalar_lea.vmem [#allocation5], %s225
          %227 = dma.done %s224, 16
        $region44: #{tpu_custom_call.1} parent=39 // pred_fallthru
          _
      $region40: #{tpu_custom_call.1} parent=5 // pred_fallthru
        _
    $region6: #{tpu_custom_call.1} parent=1 // loop_footer
      %s18 = sadd.s32 1, %s14
    $region7: #{tpu_custom_call.1} parent=1 // loop_footer_branch
      %13 = sbr.rel target = $region3
    $region8: #{tpu_custom_call.1} parent=1 // loop_exit
      _
    %228 = vsyncpa [#allocation3], 1
    %s229 = scalar_lea.sflag [#allocation3], 1
    %230 = vsyncpa %s229, 1
    %231 = vsyncpa [#allocation4], 1
    %s232 = scalar_lea.sflag [#allocation4], 1
    %233 = vsyncpa %s232, 1

</llo_original>
